<compile_context>
chip_gen: v6e
topology: v6e:2x2x1
jax: 0.10.0
libtpu: 0.0.40
codegen_flags: <defaults>
</compile_context>

<pallas_src>
import math

import jax
import jax.numpy as jnp
from jax.experimental import pallas as pl
from jax.experimental.pallas import tpu as pltpu


def spiral_mlp_kernel(x_ref, w1_ref, b1_ref, w2_ref, b2_ref, w3_ref, b3_ref,
                      o_ref):
    # Feature-major tiles: x (2, T), hiddens (10, T), out (3, T).
    x = x_ref[...]                      # (2, T)
    w1 = w1_ref[...]                    # (10, 2)  -- PyTorch (out, in) layout

    # Layer 1: contraction dim is only 2 -> do it on the VPU as two
    # broadcast-multiply-adds over already-loaded, lane-dense vregs.
    h1 = (w1[:, 0:1] * x[0:1, :]
          + w1[:, 1:2] * x[1:2, :]
          + b1_ref[...])                # (10, T)
    h1 = jnp.maximum(h1, 0.0)

    # Layer 2: (10,10) @ (10,T) on the MXU with f32 accumulation.
    h2 = jnp.dot(w2_ref[...], h1, preferred_element_type=jnp.float32)
    h2 = jnp.maximum(h2 + b2_ref[...], 0.0)

    # Layer 3: (3,10) @ (10,T).
    out = jnp.dot(w3_ref[...], h2, preferred_element_type=jnp.float32)
    o_ref[...] = (out + b3_ref[...]).astype(o_ref.dtype)


def spiral_model_forward(x, params, *, tile_n=512):
    """x: (N, 2) float32.  params: PyTorch-layout weights (out,in), biases (out,1)."""
    N, D_in = x.shape
    w1, b1 = params["w1"], params["b1"]   # (10, 2), (10, 1)
    w2, b2 = params["w2"], params["b2"]   # (10, 10), (10, 1)
    w3, b3 = params["w3"], params["b3"]   # (3, 10), (3, 1)
    D_out = w3.shape[0]

    # Pad the batch (lane axis) up to a multiple of 128, clamp the tile for
    # tiny batches, then pad up to a whole number of tiles.
    n128 = pl.cdiv(N, 128) * 128
    tile_n = min(tile_n, n128)
    n_pad = pl.cdiv(n128, tile_n) * tile_n

    # Feature-major layout: (2, n_pad); padded columns are zeros (sliced off later).
    x_fm = jnp.zeros((D_in, n_pad), x.dtype).at[:, :N].set(x.T)

    # Weights/biases are tiny and constant across the grid: full-array blocks
    # with a constant index_map -> fetched once, resident in VMEM.
    full = lambda a: pl.BlockSpec(a.shape, lambda i: (0,) * a.ndim)

    out_fm = pl.pallas_call(
        spiral_mlp_kernel,
        out_shape=jax.ShapeDtypeStruct((D_out, n_pad), x.dtype),
        grid=(n_pad // tile_n,),
        in_specs=[
            pl.BlockSpec((D_in, tile_n), lambda i: (0, i)),
            full(w1), full(b1),
            full(w2), full(b2),
            full(w3), full(b3),
        ],
        out_specs=pl.BlockSpec((D_out, tile_n), lambda i: (0, i)),
        compiler_params=pltpu.CompilerParams(
            dimension_semantics=("parallel",)),
    )(x_fm, w1, b1, w2, b2, w3, b3)

    return out_fm[:, :N].T              # back to batch-major (N, 3)


def init_params(key):
    """Deterministic init matching nn.Linear (weights stored as (out, in))."""
    def linear(k, fan_in, fan_out):
        k_w, k_b = jax.random.split(k)
        bound = 1.0 / math.sqrt(fan_in)
        w = jax.random.uniform(k_w, (fan_out, fan_in), jnp.float32, -bound, bound)
        b = jax.random.uniform(k_b, (fan_out, 1), jnp.float32, -bound, bound)
        return w, b

    k1, k2, k3 = jax.random.split(key, 3)
    w1, b1 = linear(k1, 2, 10)
    w2, b2 = linear(k2, 10, 10)
    w3, b3 = linear(k3, 10, 3)
    return {"w1": w1, "b1": b1, "w2": w2, "b2": b2, "w3": w3, "b3": b3}


def reference_forward(x, p):
    # Matches torch: linear3(relu(linear2(relu(linear1(x)))))
    h1 = jnp.maximum(x @ p["w1"].T + p["b1"].T, 0.0)
    h2 = jnp.maximum(h1 @ p["w2"].T + p["b2"].T, 0.0)
    return h2 @ p["w3"].T + p["b3"].T


if __name__ == "__main__":
    key = jax.random.PRNGKey(0)
    k_params, k_x = jax.random.split(key)

    params = init_params(k_params)
    N = 64
    x = jax.random.normal(k_x, (N, 2), jnp.float32)

    out = spiral_model_forward(x, params)
    out = jax.block_until_ready(out)

    ref = reference_forward(x, params)
    assert out.shape == (N, 3)
    assert jnp.allclose(out, ref, atol=1e-5, rtol=1e-5), "mismatch vs reference"

    print("KERNEL_OK")
</pallas_src>

<mosaic_0001>
module attributes {stable_mosaic.version = 11 : i64} {
  func.func @spiral_mlp_kernel(%arg0: i32, %arg1: memref<2x128xf32, #tpu.memory_space<vmem>>, %arg2: memref<10x2xf32, #tpu.memory_space<vmem>>, %arg3: memref<10x1xf32, #tpu.memory_space<vmem>>, %arg4: memref<10x10xf32, #tpu.memory_space<vmem>>, %arg5: memref<10x1xf32, #tpu.memory_space<vmem>>, %arg6: memref<3x10xf32, #tpu.memory_space<vmem>>, %arg7: memref<3x1xf32, #tpu.memory_space<vmem>>, %arg8: memref<3x128xf32, #tpu.memory_space<vmem>>) attributes {dimension_semantics = [#tpu.dimension_semantics<parallel>], iteration_bounds = array<i64: 1>, scalar_prefetch = 0 : i64, scratch_operands = 0 : i64, tpu.core_type = #tpu.core_type<tc>, window_params = [{transform_indices = @transform_0, window_bounds = array<i64: 2, 128>}, {pipeline_mode = #tpu.pipeline_mode<synchronous>, transform_indices = @transform_1, window_bounds = array<i64: 10, 2>}, {pipeline_mode = #tpu.pipeline_mode<synchronous>, transform_indices = @transform_2, window_bounds = array<i64: 10, 1>}, {pipeline_mode = #tpu.pipeline_mode<synchronous>, transform_indices = @transform_3, window_bounds = array<i64: 10, 10>}, {pipeline_mode = #tpu.pipeline_mode<synchronous>, transform_indices = @transform_4, window_bounds = array<i64: 10, 1>}, {pipeline_mode = #tpu.pipeline_mode<synchronous>, transform_indices = @transform_5, window_bounds = array<i64: 3, 10>}, {pipeline_mode = #tpu.pipeline_mode<synchronous>, transform_indices = @transform_6, window_bounds = array<i64: 3, 1>}, {transform_indices = @transform_7, window_bounds = array<i64: 3, 128>}]} {
    %c0 = arith.constant 0 : index
    %c0_0 = arith.constant 0 : index
    %0 = vector.load %arg1[%c0, %c0_0] : memref<2x128xf32, #tpu.memory_space<vmem>>, vector<2x128xf32>
    %c0_1 = arith.constant 0 : index
    %c0_2 = arith.constant 0 : index
    %1 = vector.load %arg2[%c0_1, %c0_2] : memref<10x2xf32, #tpu.memory_space<vmem>>, vector<10x2xf32>
    %2 = vector.extract_strided_slice %1 {offsets = [0, 0], sizes = [10, 1], strides = [1, 1]} : vector<10x2xf32> to vector<10x1xf32>
    %3 = vector.extract_strided_slice %0 {offsets = [0, 0], sizes = [1, 128], strides = [1, 1]} : vector<2x128xf32> to vector<1x128xf32>
    %4 = vector.broadcast %2 : vector<10x1xf32> to vector<10x128xf32>
    %5 = vector.broadcast %3 : vector<1x128xf32> to vector<10x128xf32>
    %6 = arith.mulf %4, %5 : vector<10x128xf32>
    %7 = vector.extract_strided_slice %1 {offsets = [0, 1], sizes = [10, 1], strides = [1, 1]} : vector<10x2xf32> to vector<10x1xf32>
    %8 = vector.extract_strided_slice %0 {offsets = [1, 0], sizes = [1, 128], strides = [1, 1]} : vector<2x128xf32> to vector<1x128xf32>
    %9 = vector.broadcast %7 : vector<10x1xf32> to vector<10x128xf32>
    %10 = vector.broadcast %8 : vector<1x128xf32> to vector<10x128xf32>
    %11 = arith.mulf %9, %10 : vector<10x128xf32>
    %12 = arith.addf %6, %11 : vector<10x128xf32>
    %c0_3 = arith.constant 0 : index
    %c0_4 = arith.constant 0 : index
    %13 = vector.load %arg3[%c0_3, %c0_4] : memref<10x1xf32, #tpu.memory_space<vmem>>, vector<10x1xf32>
    %14 = vector.broadcast %13 : vector<10x1xf32> to vector<10x128xf32>
    %15 = arith.addf %12, %14 : vector<10x128xf32>
    %cst = arith.constant 0.000000e+00 : f32
    %16 = vector.broadcast %cst : f32 to vector<10x128xf32>
    %17 = arith.maximumf %15, %16 : vector<10x128xf32>
    %c0_5 = arith.constant 0 : index
    %c0_6 = arith.constant 0 : index
    %18 = vector.load %arg4[%c0_5, %c0_6] : memref<10x10xf32, #tpu.memory_space<vmem>>, vector<10x10xf32>
    %cst_7 = arith.constant dense<0.000000e+00> : vector<10x128xf32>
    %19 = tpu.matmul %18, %17, %cst_7 {dimension_numbers = #tpu.dot_dimension_numbers<[1], [0], [0], [1], [0, 0, 1, 1], [], []>} : vector<10x10xf32>, vector<10x128xf32>, vector<10x128xf32> -> vector<10x128xf32>
    %c0_8 = arith.constant 0 : index
    %c0_9 = arith.constant 0 : index
    %20 = vector.load %arg5[%c0_8, %c0_9] : memref<10x1xf32, #tpu.memory_space<vmem>>, vector<10x1xf32>
    %21 = vector.broadcast %20 : vector<10x1xf32> to vector<10x128xf32>
    %22 = arith.addf %19, %21 : vector<10x128xf32>
    %cst_10 = arith.constant 0.000000e+00 : f32
    %23 = vector.broadcast %cst_10 : f32 to vector<10x128xf32>
    %24 = arith.maximumf %22, %23 : vector<10x128xf32>
    %c0_11 = arith.constant 0 : index
    %c0_12 = arith.constant 0 : index
    %25 = vector.load %arg6[%c0_11, %c0_12] : memref<3x10xf32, #tpu.memory_space<vmem>>, vector<3x10xf32>
    %cst_13 = arith.constant dense<0.000000e+00> : vector<3x128xf32>
    %26 = tpu.matmul %25, %24, %cst_13 {dimension_numbers = #tpu.dot_dimension_numbers<[1], [0], [0], [1], [0, 0, 1, 1], [], []>} : vector<3x10xf32>, vector<10x128xf32>, vector<3x128xf32> -> vector<3x128xf32>
    %c0_14 = arith.constant 0 : index
    %c0_15 = arith.constant 0 : index
    %27 = vector.load %arg7[%c0_14, %c0_15] : memref<3x1xf32, #tpu.memory_space<vmem>>, vector<3x1xf32>
    %28 = vector.broadcast %27 : vector<3x1xf32> to vector<3x128xf32>
    %29 = arith.addf %26, %28 : vector<3x128xf32>
    %c0_16 = arith.constant 0 : index
    %c0_17 = arith.constant 0 : index
    %30 = vector.load %arg8[%c0_16, %c0_17] : memref<3x128xf32, #tpu.memory_space<vmem>>, vector<3x128xf32>
    tpu.vector_store %arg8[%c0_16, %c0_17], %29 {strides = array<i32>} : memref<3x128xf32, #tpu.memory_space<vmem>>, vector<3x128xf32>,
    return
  }
  func.func @transform_0(%arg0: i32) -> (i32, i32) {
    %c0_i32 = arith.constant 0 : i32
    %c0_i32_0 = arith.constant 0 : i32
    return %c0_i32, %arg0 : i32, i32
  }
  func.func @transform_1(%arg0: i32) -> (i32, i32) {
    %c0_i32 = arith.constant 0 : i32
    %c0_i32_0 = arith.constant 0 : i32
    %c0_i32_1 = arith.constant 0 : i32
    return %c0_i32, %c0_i32_0 : i32, i32
  }
  func.func @transform_2(%arg0: i32) -> (i32, i32) {
    %c0_i32 = arith.constant 0 : i32
    %c0_i32_0 = arith.constant 0 : i32
    %c0_i32_1 = arith.constant 0 : i32
    return %c0_i32, %c0_i32_0 : i32, i32
  }
  func.func @transform_3(%arg0: i32) -> (i32, i32) {
    %c0_i32 = arith.constant 0 : i32
    %c0_i32_0 = arith.constant 0 : i32
    %c0_i32_1 = arith.constant 0 : i32
    return %c0_i32, %c0_i32_0 : i32, i32
  }
  func.func @transform_4(%arg0: i32) -> (i32, i32) {
    %c0_i32 = arith.constant 0 : i32
    %c0_i32_0 = arith.constant 0 : i32
    %c0_i32_1 = arith.constant 0 : i32
    return %c0_i32, %c0_i32_0 : i32, i32
  }
  func.func @transform_5(%arg0: i32) -> (i32, i32) {
    %c0_i32 = arith.constant 0 : i32
    %c0_i32_0 = arith.constant 0 : i32
    %c0_i32_1 = arith.constant 0 : i32
    return %c0_i32, %c0_i32_0 : i32, i32
  }
  func.func @transform_6(%arg0: i32) -> (i32, i32) {
    %c0_i32 = arith.constant 0 : i32
    %c0_i32_0 = arith.constant 0 : i32
    %c0_i32_1 = arith.constant 0 : i32
    return %c0_i32, %c0_i32_0 : i32, i32
  }
  func.func @transform_7(%arg0: i32) -> (i32, i32) {
    %c0_i32 = arith.constant 0 : i32
    %c0_i32_0 = arith.constant 0 : i32
    return %c0_i32, %arg0 : i32, i32
  }
}

</mosaic_0001>

<llo_original>
// kernel: tpu_custom_call.1
$region0: #{tpu_custom_call.1}
  #allocation0 [shape = 'u32[]', space=smem, size = 0x4, offset = 0x4, fixed_abs, tag = 'smem constant byte address 0x4 - core index']
  #allocation1 [shape = 'u32[144,128]{1,0:T(1,128)}', space=vmem, size = 0x12000, scoped, tag = 'internal scratch']
  %s0 = inlined_call_operand.vmem [shape: f32[2,128], index: 0, kind: input, shape index: {}]
  %s1 = inlined_call_operand.vmem [shape: f32[10,2], index: 1, kind: input, shape index: {}]
  %s2 = inlined_call_operand.vmem [shape: f32[10,1], index: 2, kind: input, shape index: {}]
  %s3 = inlined_call_operand.vmem [shape: f32[10,10], index: 3, kind: input, shape index: {}]
  %s4 = inlined_call_operand.vmem [shape: f32[10,1], index: 4, kind: input, shape index: {}]
  %s5 = inlined_call_operand.vmem [shape: f32[3,10], index: 5, kind: input, shape index: {}]
  %s6 = inlined_call_operand.vmem [shape: f32[3,1], index: 6, kind: input, shape index: {}]
  %s7 = inlined_call_operand.hbm [shape: f32[3,128], index: 7, kind: output, shape index: {}]
  %s8 = sld [smem:[#allocation0]]
  $region38: #{tpu_custom_call.1} parent=0
    _
  %s10 = ssub.s32 1, %s8
  %s11 = scalar_select 0, %s10, %s8
  $region1: #{tpu_custom_call.1} parent=0
    #allocation2 [shape = 'u8[2048]{0}', space=vmem, size = 0x800, scoped, tag = 'output window, operand 0, single buffered']
    #allocation3 [shape = 's32[1]{0}', space=sflag, size = 0x4, scoped, tag = 'scoped memory for tpu_custom_call.1']
    %12 = vsyncpa [#allocation3], 0
    // Predicated region
    $region2: #{tpu_custom_call.1} parent=1 // pred_check
      _
    $region3: #{tpu_custom_call.1} parent=1 // pred_check_branch
      %14 = sbr.rel (0) target = $region5
    $region4: #{tpu_custom_call.1} parent=1 // pred_region
      _
    $region5: #{tpu_custom_call.1} parent=1 // pred_fallthru
      _
    // Predicated region
    $region6: #{tpu_custom_call.1} parent=1 // pred_check
      _
    $region7: #{tpu_custom_call.1} parent=1 // pred_check_branch
      %16 = sbr.rel (0) target = $region9
    $region8: #{tpu_custom_call.1} parent=1 // pred_region
      _
    $region9: #{tpu_custom_call.1} parent=1 // pred_fallthru
      _
    // Predicated region
    $region10: #{tpu_custom_call.1} parent=1 // pred_check
      _
    $region11: #{tpu_custom_call.1} parent=1 // pred_check_branch
      %18 = sbr.rel (0) target = $region13
    $region12: #{tpu_custom_call.1} parent=1 // pred_region
      _
    $region13: #{tpu_custom_call.1} parent=1 // pred_fallthru
      _
    // Predicated region
    $region14: #{tpu_custom_call.1} parent=1 // pred_check
      _
    $region15: #{tpu_custom_call.1} parent=1 // pred_check_branch
      %20 = sbr.rel (0) target = $region17
    $region16: #{tpu_custom_call.1} parent=1 // pred_region
      _
    $region17: #{tpu_custom_call.1} parent=1 // pred_fallthru
      _
    // Predicated region
    $region18: #{tpu_custom_call.1} parent=1 // pred_check
      _
    $region19: #{tpu_custom_call.1} parent=1 // pred_check_branch
      %22 = sbr.rel (0) target = $region21
    $region20: #{tpu_custom_call.1} parent=1 // pred_region
      _
    $region21: #{tpu_custom_call.1} parent=1 // pred_fallthru
      _
    // Predicated region
    $region22: #{tpu_custom_call.1} parent=1 // pred_check
      _
    $region23: #{tpu_custom_call.1} parent=1 // pred_check_branch
      %24 = sbr.rel (0) target = $region25
    $region24: #{tpu_custom_call.1} parent=1 // pred_region
      _
    $region25: #{tpu_custom_call.1} parent=1 // pred_fallthru
      _
    // Predicated region
    $region26: #{tpu_custom_call.1} parent=1 // pred_check
      _
    $region27: #{tpu_custom_call.1} parent=1 // pred_check_branch
      %26 = sbr.rel (0) target = $region29
    $region28: #{tpu_custom_call.1} parent=1 // pred_region
      _
    $region29: #{tpu_custom_call.1} parent=1 // pred_fallthru
      _
    %v27 = vld [vmem:[%s0] sm:$0x3]
    %v28 = vld [vmem:[%s1] sm:$0xff]
    %v29 = vld [vmem:[%s1 + $0x8] sm:$0x3]
    %31 = vset.pattern.permute.xlu0 0
    %32 = vperm.xlu0 %31, %v28
    %v33 = vpop.permute.xlu0 %32
    %36 = vset.pattern.permute.xlu0 0
    %37 = vperm.xlu0 %36, %v29
    %v38 = vpop.permute.xlu0 %37
    %v40 = vlaneseq
    %v41 = vshrl.u32 %v40, 7
    %v42 = vsub.s32 0, %v41
    %v43 = vrot.slane %v27, %v42
    %v44 = vmul.f32 %v33, %v43
    %v45 = vmul.f32 %v38, %v43
    %46 = vset.pattern.permute.xlu0 1
    %47 = vperm.xlu0 %46, %v28
    %v48 = vpop.permute.xlu0 %47
    %50 = vset.pattern.permute.xlu0 1
    %51 = vperm.xlu0 %50, %v29
    %v52 = vpop.permute.xlu0 %51
    %v54 = vlaneseq
    %v55 = vshrl.u32 %v54, 7
    %v56 = vsub.s32 1, %v55
    %v57 = vrot.slane %v27, %v56
    %v58 = vmul.f32 %v48, %v57
    %v59 = vmul.f32 %v52, %v57
    %v60 = vadd.f32 %v44, %v58
    %v61 = vadd.f32 %v45, %v59
    %v62 = vld [vmem:[%s2] sm:$0xff]
    %v63 = vld [vmem:[%s2 + $0x8] sm:$0x3]
    %65 = vset.pattern.permute.xlu0 0
    %66 = vperm.xlu0 %65, %v62
    %v67 = vpop.permute.xlu0 %66
    %70 = vset.pattern.permute.xlu0 0
    %71 = vperm.xlu0 %70, %v63
    %v72 = vpop.permute.xlu0 %71
    %v74 = vadd.f32 %v60, %v67
    %v75 = vadd.f32 %v61, %v72
    %v76 = vmax.f32 %v74, 0.0
    %v77 = vmax.f32 %v75, 0.0
    %v78 = vld [vmem:[%s3] sm:$0xff]
    %v79 = vld [vmem:[%s3 + $0x8] sm:$0x3]
    %v80 = vld [vmem:[%s4] sm:$0xff]
    %v81 = vld [vmem:[%s4 + $0x8] sm:$0x3]
    %83 = vset.pattern.permute.xlu0 0
    %84 = vperm.xlu0 %83, %v80
    %v85 = vpop.permute.xlu0 %84
    %88 = vset.pattern.permute.xlu0 0
    %89 = vperm.xlu0 %88, %v81
    %v90 = vpop.permute.xlu0 %89
    %vm92 = vcmask 80896
    %v94 = vsel %vm92, %v78, 0
    %v97 = vsel %vm92, %v79, 0
    %vm99 = vcmask 1041408
    %v101 = vsel %vm99, %v77, 0
    %103 = vmatprep.subr.mxu0 0.0
    %104 = vmatpush1.msra.mxu0 0.0
    %105 = vmatprep.subr.mxu0 0.0
    %106 = vmatpush1.msra.mxu0 0.0
    %107 = vmatprep.subr.mxu0 0.0
    %108 = vmatpush1.msra.mxu0 0.0
    %109 = vmatprep.subr.mxu0 0.0
    %110 = vmatpush1.msra.mxu0 0.0
    %111 = vmatprep.subr.mxu0 0.0
    %112 = vmatpush1.msra.mxu0 0.0
    %113 = vmatprep.subr.mxu0 0.0
    %114 = vmatpush1.msra.mxu0 0.0
    %115 = vmatprep.subr.mxu0 0.0
    %116 = vmatpush1.msra.mxu0 0.0
    %117 = vmatprep.subr.mxu0 0.0
    %118 = vmatpush1.msra.mxu0 0.0
    %119 = vmatprep.subr.mxu0 0.0
    %120 = vmatpush1.msra.mxu0 0.0
    %121 = vmatprep.subr.mxu0 0.0
    %122 = vmatpush1.msra.mxu0 0.0
    %123 = vmatprep.subr.mxu0 0.0
    %124 = vmatpush1.msra.mxu0 0.0
    %125 = vmatprep.subr.mxu0 0.0
    %126 = vmatpush1.msra.mxu0 0.0
    %127 = vmatprep.subr.mxu0 0.0
    %128 = vmatpush1.msra.mxu0 0.0
    %129 = vmatprep.subr.mxu0 0.0
    %130 = vmatpush1.msra.mxu0 0.0
    %131 = vmatprep.subr.mxu0 0.0
    %132 = vmatpush1.msra.mxu0 %v101
    %133 = vmatprep.subr.mxu0 0.0
    %134 = vmatpush1.msra.mxu0 %v76
    %135 = vmatprep.subr.mxu0 0.0
    %136 = vmatpush2.msra.mxu0 0.0
    %137 = vmatprep.subr.mxu0 0.0
    %138 = vmatpush2.msra.mxu0 0.0
    %139 = vmatprep.subr.mxu0 0.0
    %140 = vmatpush2.msra.mxu0 0.0
    %141 = vmatprep.subr.mxu0 0.0
    %142 = vmatpush2.msra.mxu0 0.0
    %143 = vmatprep.subr.mxu0 0.0
    %144 = vmatpush2.msra.mxu0 0.0
    %145 = vmatprep.subr.mxu0 0.0
    %146 = vmatpush2.msra.mxu0 0.0
    %147 = vmatprep.subr.mxu0 0.0
    %148 = vmatpush2.msra.mxu0 0.0
    %149 = vmatprep.subr.mxu0 0.0
    %150 = vmatpush2.msra.mxu0 0.0
    %151 = vmatprep.subr.mxu0 0.0
    %152 = vmatpush2.msra.mxu0 0.0
    %153 = vmatprep.subr.mxu0 0.0
    %154 = vmatpush2.msra.mxu0 0.0
    %155 = vmatprep.subr.mxu0 0.0
    %156 = vmatpush2.msra.mxu0 0.0
    %157 = vmatprep.subr.mxu0 0.0
    %158 = vmatpush2.msra.mxu0 0.0
    %159 = vmatprep.subr.mxu0 0.0
    %160 = vmatpush2.msra.mxu0 0.0
    %161 = vmatprep.subr.mxu0 0.0
    %162 = vmatpush2.msra.mxu0 0.0
    %163 = vmatprep.subr.mxu0 0.0
    %164 = vmatpush2.msra.mxu0 0.0
    %165 = vmatprep.subr.mxu0 0.0
    %166 = vmatpush2.msra.mxu0 0.0
    %167 = vmatprep.mubr.f32.mxu0 0.0
    %168 = vmatmul.mubr.f32.gmra.mxu0 %v94
    %v169 = vpop.f32.mrf.mxu0
    %v170 = vadd.f32 %v85, %v169
    %v171 = vpop.f32.mrf.mxu0
    %172 = vmatprep.mubr.f32.mxu0 0.0
    %173 = vmatmul.mubr.f32.gmra.mxu0 %v97
    %v174 = vpop.f32.mrf.mxu0
    %v175 = vadd.f32 %v90, %v174
    %v176 = vpop.f32.mrf.mxu0
    %177 = vdwg.mxu0
    %v178 = vmax.f32 %v170, 0.0
    %v179 = vmax.f32 %v175, 0.0
    %v180 = vld [vmem:[%s5] sm:$0x7]
    %v181 = vld [vmem:[%s6] sm:$0x7]
    %183 = vset.pattern.permute.xlu0 0
    %184 = vperm.xlu0 %183, %v181
    %v185 = vpop.permute.xlu0 %184
    %v188 = vsel %vm92, %v180, 0
    %v191 = vsel %vm99, %v179, 0
    %193 = vmatprep.subr.mxu0 0.0
    %194 = vmatpush1.msra.mxu0 0.0
    %195 = vmatprep.subr.mxu0 0.0
    %196 = vmatpush1.msra.mxu0 0.0
    %197 = vmatprep.subr.mxu0 0.0
    %198 = vmatpush1.msra.mxu0 0.0
    %199 = vmatprep.subr.mxu0 0.0
    %200 = vmatpush1.msra.mxu0 0.0
    %201 = vmatprep.subr.mxu0 0.0
    %202 = vmatpush1.msra.mxu0 0.0
    %203 = vmatprep.subr.mxu0 0.0
    %204 = vmatpush1.msra.mxu0 0.0
    %205 = vmatprep.subr.mxu0 0.0
    %206 = vmatpush1.msra.mxu0 0.0
    %207 = vmatprep.subr.mxu0 0.0
    %208 = vmatpush1.msra.mxu0 0.0
    %209 = vmatprep.subr.mxu0 0.0
    %210 = vmatpush1.msra.mxu0 0.0
    %211 = vmatprep.subr.mxu0 0.0
    %212 = vmatpush1.msra.mxu0 0.0
    %213 = vmatprep.subr.mxu0 0.0
    %214 = vmatpush1.msra.mxu0 0.0
    %215 = vmatprep.subr.mxu0 0.0
    %216 = vmatpush1.msra.mxu0 0.0
    %217 = vmatprep.subr.mxu0 0.0
    %218 = vmatpush1.msra.mxu0 0.0
    %219 = vmatprep.subr.mxu0 0.0
    %220 = vmatpush1.msra.mxu0 0.0
    %221 = vmatprep.subr.mxu0 0.0
    %222 = vmatpush1.msra.mxu0 %v191
    %223 = vmatprep.subr.mxu0 0.0
    %224 = vmatpush1.msra.mxu0 %v178
    %225 = vmatprep.subr.mxu0 0.0
    %226 = vmatpush2.msra.mxu0 0.0
    %227 = vmatprep.subr.mxu0 0.0
    %228 = vmatpush2.msra.mxu0 0.0
    %229 = vmatprep.subr.mxu0 0.0
    %230 = vmatpush2.msra.mxu0 0.0
    %231 = vmatprep.subr.mxu0 0.0
    %232 = vmatpush2.msra.mxu0 0.0
    %233 = vmatprep.subr.mxu0 0.0
    %234 = vmatpush2.msra.mxu0 0.0
    %235 = vmatprep.subr.mxu0 0.0
    %236 = vmatpush2.msra.mxu0 0.0
    %237 = vmatprep.subr.mxu0 0.0
    %238 = vmatpush2.msra.mxu0 0.0
    %239 = vmatprep.subr.mxu0 0.0
    %240 = vmatpush2.msra.mxu0 0.0
    %241 = vmatprep.subr.mxu0 0.0
    %242 = vmatpush2.msra.mxu0 0.0
    %243 = vmatprep.subr.mxu0 0.0
    %244 = vmatpush2.msra.mxu0 0.0
    %245 = vmatprep.subr.mxu0 0.0
    %246 = vmatpush2.msra.mxu0 0.0
    %247 = vmatprep.subr.mxu0 0.0
    %248 = vmatpush2.msra.mxu0 0.0
    %249 = vmatprep.subr.mxu0 0.0
    %250 = vmatpush2.msra.mxu0 0.0
    %251 = vmatprep.subr.mxu0 0.0
    %252 = vmatpush2.msra.mxu0 0.0
    %253 = vmatprep.subr.mxu0 0.0
    %254 = vmatpush2.msra.mxu0 0.0
    %255 = vmatprep.subr.mxu0 0.0
    %256 = vmatpush2.msra.mxu0 0.0
    %257 = vmatprep.mubr.f32.mxu0 0.0
    %258 = vmatmul.mubr.f32.gmra.mxu0 %v188
    %v259 = vpop.f32.mrf.mxu0
    %v260 = vadd.f32 %v185, %v259
    %v261 = vpop.f32.mrf.mxu0
    %262 = vdwg.mxu0
    %263 = vst [vmem:[#allocation2] sm:$0x7] %v260
    // Predicated region
    $region30: #{tpu_custom_call.1} parent=1 // pred_check
      _
    $region31: #{tpu_custom_call.1} parent=1 // pred_check_branch
      %265 = sbr.rel (0) target = $region33
    $region32: #{tpu_custom_call.1} parent=1 // pred_region
      %s267 = ssub.s32 64, 64
      %268 = vsyncadd [#allocation3], %s267
      %s270 = sshll.u32 [#allocation2], 4
      %s271 = int_to_ptr.vmem [resolvable:$true] %s270
      %273 = dma.vmem_to_hbm [thread:$0]  %s271, 64, %s7, [#allocation3]
    $region33: #{tpu_custom_call.1} parent=1 // pred_fallthru
      _
    // Predicated region
    $region34: #{tpu_custom_call.1} parent=1 // pred_check
      _
    $region35: #{tpu_custom_call.1} parent=1 // pred_check_branch
      %275 = sbr.rel (0) target = $region37
    $region36: #{tpu_custom_call.1} parent=1 // pred_region
      %276 = dma.done [#allocation3], 64
    $region37: #{tpu_custom_call.1} parent=1 // pred_fallthru
      _
    %277 = vsyncpa [#allocation3], 1

</llo_original>
